<compile_context>
chip_gen: v7x
topology: tpu7x:2x2x1
jax: 0.10.0
libtpu: 0.0.40
codegen_flags: <defaults>
</compile_context>

<pallas_src>
import functools

import jax
import jax.numpy as jnp
from jax.experimental import pallas as pl
from jax.experimental.pallas import tpu as pltpu


def _round_up(x, m):
    return ((x + m - 1) // m) * m


def _round_down(x, m):
    return (x // m) * m


def _cdiv(a, b):
    return (a + b - 1) // b


def _frozen_bn_kernel(x_ref, scale_ref, shift_ref, o_ref, *, tile_rows,
                      params_resident):
    # x_ref/o_ref: (tile_rows, tile_hw).
    # scale/shift: resident (rows_pad, 1) sliced per row-tile, or per-tile (tile_rows, 1).
    if params_resident:
        r0 = pl.multiple_of(pl.program_id(0) * tile_rows, tile_rows)
        scale = scale_ref[pl.ds(r0, tile_rows), :]
        shift = shift_ref[pl.ds(r0, tile_rows), :]
    else:
        scale = scale_ref[...]
        shift = shift_ref[...]
    # f32 math everywhere (v5e has no bf16 VALU; matches PyTorch), cast at store.
    # TODO(synk): integer input dtypes would need round/clamp before the cast;
    # BatchNorm only sees float activations so only float is supported here.
    x = x_ref[...].astype(jnp.float32)
    o_ref[...] = (x * scale + shift).astype(o_ref.dtype)


def _pick_tiles(rows, hw, itemsize, sublane, block_target, min_blocks):
    """Choose (tile_rows, tile_hw).

    Tile dims are either hardware-aligned (sublane / 128-lane multiples) or the
    full array extent, so x never needs wrapper-side padding; ragged boundary
    blocks rely on Pallas's masked partial reads/writes.
    """
    # Per-row VMEM cost: x row + the (row, 1) scale/shift padded to 128 lanes.
    row_cost = hw * itemsize + 2 * 2 * 128 * 4

    if sublane * row_cost <= block_target:
        # Full spatial extent per block: lane-dense, one input DMA per block,
        # masked tail vst when hw % 128 != 0 (vs. an extra HBM pass for padding).
        tile_hw = hw
        budget_rows = _round_down(block_target // row_cost, sublane)
        tile_rows = rows if budget_rows >= rows else budget_rows
    else:
        # Very large feature maps: also tile the lane axis in 128-lane multiples.
        tile_rows = rows if rows <= sublane else sublane
        budget_hw = _round_down(block_target // (sublane * itemsize), 128)
        tile_hw = hw if budget_hw >= hw else max(128, budget_hw)

    def _nblocks(tr, th):
        return _cdiv(rows, tr) * _cdiv(hw, th)

    # Enough grid steps for v7x's two TensorCores and for the in/compute/out DMA
    # pipeline to overlap.  Prefer splitting rows; fall back to hw (128-multiples).
    if _nblocks(tile_rows, tile_hw) < min_blocks and rows > sublane:
        want = _cdiv(min_blocks, _cdiv(hw, tile_hw))
        cand = max(sublane, _round_down(_cdiv(rows, want), sublane))
        if cand < rows:
            tile_rows = min(tile_rows, cand)
    if _nblocks(tile_rows, tile_hw) < min_blocks and hw > 256:
        want = _cdiv(min_blocks, _cdiv(rows, tile_rows))
        cand = max(128, _round_down(_cdiv(hw, want), 128))
        if cand < hw:
            tile_hw = min(tile_hw, cand)
    return tile_rows, tile_hw


def frozen_batch_norm_2d(x, weight, bias, running_mean, running_var, eps=1e-5):
    """FrozenBatchNorm2d forward. x: (N, C, H, W). Params: (C,)."""
    N, C, H, W = x.shape
    rows, hw = N * C, H * W
    itemsize = jnp.dtype(x.dtype).itemsize

    # ---- fuse the frozen affine once, in f32 ---------------------------------
    scale_c = weight.astype(jnp.float32) * jax.lax.rsqrt(
        running_var.astype(jnp.float32) + jnp.float32(eps))
    shift_c = bias.astype(jnp.float32) - running_mean.astype(jnp.float32) * scale_c

    # ---- lane-dense 2-D view of x: no pad, no copy, no output slice ----------
    x2 = x.reshape(rows, hw)

    # ---- generation-aware block sizing ----------------------------------------
    try:
        vmem_cap = int(pltpu.get_tpu_info().vmem_capacity_bytes)
    except Exception:
        vmem_cap = 64 << 20                    # conservative (v7x-sized) default
    vmem_cap = max(vmem_cap, 16 << 20)
    # HBM bandwidth saturates by ~1-4 MiB blocks; bigger just burns VMEM headroom.
    block_target = min(4 << 20, vmem_cap // 16)

    sublane = max(8, 32 // itemsize)           # 8 (f32) / 16 (bf16) / 32 (int8)
    total_bytes = rows * hw * itemsize
    if total_bytes >= (32 << 20):
        min_blocks = 16                        # >= 8 medium blocks per v7x core
    elif total_bytes >= (4 << 20):
        min_blocks = 8
    elif total_bytes >= (1 << 20):
        min_blocks = 2
    else:
        min_blocks = 1                         # tiny: per-step overhead dominates

    tile_rows, tile_hw = _pick_tiles(rows, hw, itemsize, sublane,
                                     block_target, min_blocks)
    grid = (_cdiv(rows, tile_rows), _cdiv(hw, tile_hw))

    # ---- tiny per-row scale/shift vectors -------------------------------------
    # Pad ONLY these (rows, 1) vectors (never x) so the in-kernel dynamic slice
    # of the resident copy can never walk past its buffer.
    rows_pad = _round_up(rows, tile_rows)
    scale_r = jnp.broadcast_to(scale_c[None, :], (N, C)).reshape(rows, 1)
    shift_r = jnp.broadcast_to(shift_c[None, :], (N, C)).reshape(rows, 1)
    if rows_pad != rows:
        scale_r = jnp.pad(scale_r, ((0, rows_pad - rows), (0, 0)))
        shift_r = jnp.pad(shift_r, ((0, rows_pad - rows), (0, 0)))

    # Resident params (one DMA total) while their lane-padded VMEM footprint is
    # small; otherwise small per-row-tile blocks (DMA only re-issued when the
    # row tile changes).
    params_resident = rows_pad <= 2048
    if params_resident:
        p_spec = pl.BlockSpec((rows_pad, 1), lambda i, j: (0, 0))
        param_vmem = 2 * rows_pad * 128 * 4
    else:
        p_spec = pl.BlockSpec((tile_rows, 1), lambda i, j: (i, 0))
        param_vmem = 2 * 2 * tile_rows * 128 * 4

    x_spec = pl.BlockSpec((tile_rows, tile_hw), lambda i, j: (i, j))

    # ---- VMEM budget: x + out double-buffered + params + headroom -------------
    block_bytes = tile_rows * tile_hw * itemsize
    vmem_need = 4 * block_bytes + param_vmem + (2 << 20)
    vmem_limit = int(min(max(vmem_need, 16 << 20), 48 << 20, (vmem_cap * 3) // 4))

    kernel = functools.partial(_frozen_bn_kernel, tile_rows=tile_rows,
                               params_resident=params_resident)

    out2 = pl.pallas_call(
        kernel,
        out_shape=jax.ShapeDtypeStruct((rows, hw), x.dtype),
        grid_spec=pltpu.PrefetchScalarGridSpec(
            num_scalar_prefetch=0,
            grid=grid,
            in_specs=[x_spec, p_spec, p_spec],
            out_specs=x_spec,
        ),
        compiler_params=pltpu.CompilerParams(
            dimension_semantics=("parallel", "parallel"),
            vmem_limit_bytes=vmem_limit,
        ),
    )(x2, scale_r, shift_r)

    return out2.reshape(N, C, H, W)


def frozen_batch_norm_2d_ref(x, weight, bias, running_mean, running_var, eps=1e-5):
    """Pure-JAX reference mirroring the PyTorch forward."""
    w = weight.reshape(1, -1, 1, 1)
    b = bias.reshape(1, -1, 1, 1)
    rv = running_var.reshape(1, -1, 1, 1)
    rm = running_mean.reshape(1, -1, 1, 1)
    scale = w * (1.0 / jnp.sqrt(rv + eps))
    shift = b - rm * scale
    return x * scale + shift


if __name__ == "__main__":
    key = jax.random.PRNGKey(0)
    k_x, k_w, k_b, k_rm, k_rv = jax.random.split(key, 5)

    N, C = 2, 4
    # Deterministic "frozen" buffers (module init is ones/zeros; perturb so the
    # affine transform is non-trivial but reproducible).
    weight = jnp.ones((C,), jnp.float32) + 0.1 * jax.random.normal(k_w, (C,))
    bias = jnp.zeros((C,), jnp.float32) + 0.1 * jax.random.normal(k_b, (C,))
    running_mean = 0.1 * jax.random.normal(k_rm, (C,))
    running_var = jnp.ones((C,), jnp.float32) + 0.1 * jax.random.uniform(k_rv, (C,))

    # Check 1: 128-aligned spatial extent (16x16).
    x1 = jax.random.normal(k_x, (N, C, 16, 16), dtype=jnp.float32)
    out1 = jax.block_until_ready(
        frozen_batch_norm_2d(x1, weight, bias, running_mean, running_var))
    ref1 = frozen_batch_norm_2d_ref(x1, weight, bias, running_mean, running_var)
    assert out1.shape == x1.shape
    assert jnp.allclose(out1, ref1, atol=1e-5, rtol=1e-5), "mismatch (aligned)"

    # Check 2: unaligned spatial extent (14x14 -> H*W = 196, masked tail path,
    # no wrapper-side pad or slice).
    x2 = jax.random.normal(k_x, (N, C, 14, 14), dtype=jnp.float32)
    out2 = jax.block_until_ready(
        frozen_batch_norm_2d(x2, weight, bias, running_mean, running_var))
    ref2 = frozen_batch_norm_2d_ref(x2, weight, bias, running_mean, running_var)
    assert out2.shape == x2.shape
    assert jnp.allclose(out2, ref2, atol=1e-5, rtol=1e-5), "mismatch (unaligned)"

    print("KERNEL_OK")
</pallas_src>

<mosaic_0001>
module attributes {stable_mosaic.version = 11 : i64} {
  func.func @_frozen_bn_kernel(%arg0: i32, %arg1: i32, %arg2: memref<8x256xf32, #tpu.memory_space<vmem>>, %arg3: memref<8x1xf32, #tpu.memory_space<vmem>>, %arg4: memref<8x1xf32, #tpu.memory_space<vmem>>, %arg5: memref<8x256xf32, #tpu.memory_space<vmem>>) attributes {dimension_semantics = [#tpu.dimension_semantics<parallel>, #tpu.dimension_semantics<parallel>], iteration_bounds = array<i64: 1, 1>, scalar_prefetch = 0 : i64, scratch_operands = 0 : i64, tpu.core_type = #tpu.core_type<tc>, window_params = [{transform_indices = @transform_0, window_bounds = array<i64: 8, 256>}, {pipeline_mode = #tpu.pipeline_mode<synchronous>, transform_indices = @transform_1, window_bounds = array<i64: 8, 1>}, {pipeline_mode = #tpu.pipeline_mode<synchronous>, transform_indices = @transform_2, window_bounds = array<i64: 8, 1>}, {transform_indices = @transform_3, window_bounds = array<i64: 8, 256>}]} {
    %c8_i32 = arith.constant 8 : i32
    %0 = arith.muli %arg0, %c8_i32 : i32
    %1 = tpu.assume_multiple %0, 8 : i32
    %2 = arith.index_cast %1 : i32 to index
    %c0 = arith.constant 0 : index
    %3 = vector.load %arg3[%2, %c0] : memref<8x1xf32, #tpu.memory_space<vmem>>, vector<8x1xf32>
    %4 = arith.index_cast %1 : i32 to index
    %c0_0 = arith.constant 0 : index
    %5 = vector.load %arg4[%4, %c0_0] : memref<8x1xf32, #tpu.memory_space<vmem>>, vector<8x1xf32>
    %c0_1 = arith.constant 0 : index
    %c0_2 = arith.constant 0 : index
    %6 = vector.load %arg2[%c0_1, %c0_2] : memref<8x256xf32, #tpu.memory_space<vmem>>, vector<8x256xf32>
    %7 = vector.broadcast %3 : vector<8x1xf32> to vector<8x256xf32>
    %8 = arith.mulf %6, %7 : vector<8x256xf32>
    %9 = vector.broadcast %5 : vector<8x1xf32> to vector<8x256xf32>
    %10 = arith.addf %8, %9 : vector<8x256xf32>
    %c0_3 = arith.constant 0 : index
    %c0_4 = arith.constant 0 : index
    %11 = vector.load %arg5[%c0_3, %c0_4] : memref<8x256xf32, #tpu.memory_space<vmem>>, vector<8x256xf32>
    tpu.vector_store %arg5[%c0_3, %c0_4], %10 {strides = array<i32>} : memref<8x256xf32, #tpu.memory_space<vmem>>, vector<8x256xf32>,
    return
  }
  func.func @transform_0(%arg0: i32, %arg1: i32) -> (i32, i32) {
    %c0_i32 = arith.constant 0 : i32
    return %arg0, %arg1 : i32, i32
  }
  func.func @transform_1(%arg0: i32, %arg1: i32) -> (i32, i32) {
    %c0_i32 = arith.constant 0 : i32
    %c0_i32_0 = arith.constant 0 : i32
    %c0_i32_1 = arith.constant 0 : i32
    return %c0_i32, %c0_i32_0 : i32, i32
  }
  func.func @transform_2(%arg0: i32, %arg1: i32) -> (i32, i32) {
    %c0_i32 = arith.constant 0 : i32
    %c0_i32_0 = arith.constant 0 : i32
    %c0_i32_1 = arith.constant 0 : i32
    return %c0_i32, %c0_i32_0 : i32, i32
  }
  func.func @transform_3(%arg0: i32, %arg1: i32) -> (i32, i32) {
    %c0_i32 = arith.constant 0 : i32
    return %arg0, %arg1 : i32, i32
  }
}

</mosaic_0001>

<llo_original>
// kernel: tpu_custom_call.1
$region0: #{tpu_custom_call.1}
  #allocation0 [shape = 'u32[]', space=smem, size = 0x4, offset = 0x4, fixed_abs, tag = 'smem constant byte address 0x4 - core index']
  #allocation1 [shape = 'u32[144,128]{1,0:T(1,128)}', space=vmem, size = 0x12000, scoped, tag = 'internal scratch']
  %s0 = inlined_call_operand.vmem [shape: f32[8,256], index: 0, kind: input, shape index: {}]
  %s1 = inlined_call_operand.vmem [shape: f32[8,1], index: 1, kind: input, shape index: {}]
  %s2 = inlined_call_operand.vmem [shape: f32[8,1], index: 2, kind: input, shape index: {}]
  %s3 = inlined_call_operand.hbm [shape: f32[8,256], index: 3, kind: output, shape index: {}]
  %s4 = sld [smem:[#allocation0]]
  $region22: #{tpu_custom_call.1} parent=0
    _
  %s6 = ssub.s32 1, %s4
  %s7 = scalar_select 0, %s6, %s4
  $region1: #{tpu_custom_call.1} parent=0
    #allocation2 [shape = 'u8[8192]{0}', space=vmem, size = 0x2000, scoped, tag = 'output window, operand 0, single buffered']
    #allocation3 [shape = 's32[1]{0}', space=sflag, size = 0x4, scoped, tag = 'scoped memory for tpu_custom_call.1']
    %8 = vsyncpa [#allocation3], 0
    // Predicated region
    $region2: #{tpu_custom_call.1} parent=1 // pred_check
      _
    $region3: #{tpu_custom_call.1} parent=1 // pred_check_branch
      %10 = sbr.rel (0) target = $region5
    $region4: #{tpu_custom_call.1} parent=1 // pred_region
      _
    $region5: #{tpu_custom_call.1} parent=1 // pred_fallthru
      _
    // Predicated region
    $region6: #{tpu_custom_call.1} parent=1 // pred_check
      _
    $region7: #{tpu_custom_call.1} parent=1 // pred_check_branch
      %12 = sbr.rel (0) target = $region9
    $region8: #{tpu_custom_call.1} parent=1 // pred_region
      _
    $region9: #{tpu_custom_call.1} parent=1 // pred_fallthru
      _
    // Predicated region
    $region10: #{tpu_custom_call.1} parent=1 // pred_check
      _
    $region11: #{tpu_custom_call.1} parent=1 // pred_check_branch
      %14 = sbr.rel (0) target = $region13
    $region12: #{tpu_custom_call.1} parent=1 // pred_region
      _
    $region13: #{tpu_custom_call.1} parent=1 // pred_fallthru
      _
    %s15 = smul.u32 0, 8
    %s16 = scalar_lea.vmem %s1, %s15
    %v17 = vld [vmem:[%s16] sm:$0xff]
    %s18 = scalar_lea.vmem %s2, %s15
    %v19 = vld [vmem:[%s18] sm:$0xff]
    %v20 = vld [vmem:[%s0] sm:$0xff]
    %v21 = vld [vmem:[%s0 + $0x8] sm:$0xff]
    %23 = vset.pattern.permute.xlu0 0
    %24 = vperm.xlu0 %23, %v17
    %v25 = vpop.permute.xlu0 %24
    %v27 = vmul.f32 %v20, %v25
    %v28 = vmul.f32 %v21, %v25
    %30 = vset.pattern.permute.xlu0 0
    %31 = vperm.xlu0 %30, %v19
    %v32 = vpop.permute.xlu0 %31
    %v34 = vadd.f32 %v27, %v32
    %v35 = vadd.f32 %v28, %v32
    %36 = vst [vmem:[#allocation2] sm:$0xff] %v34
    %37 = vst [vmem:[#allocation2 + $0x8] sm:$0xff] %v35
    // Predicated region
    $region14: #{tpu_custom_call.1} parent=1 // pred_check
      _
    $region15: #{tpu_custom_call.1} parent=1 // pred_check_branch
      %39 = sbr.rel (0) target = $region17
    $region16: #{tpu_custom_call.1} parent=1 // pred_region
      %s41 = ssub.s32 256, 256
      %42 = vsyncadd [#allocation3], %s41
      %s44 = sshll.u32 [#allocation2], 4
      %s45 = int_to_ptr.vmem [resolvable:$true] %s44
      %47 = dma.vmem_to_hbm [thread:$0]  %s45, 256, %s3, [#allocation3]
    $region17: #{tpu_custom_call.1} parent=1 // pred_fallthru
      _
    // Predicated region
    $region18: #{tpu_custom_call.1} parent=1 // pred_check
      _
    $region19: #{tpu_custom_call.1} parent=1 // pred_check_branch
      %49 = sbr.rel (0) target = $region21
    $region20: #{tpu_custom_call.1} parent=1 // pred_region
      %50 = dma.done [#allocation3], 256
    $region21: #{tpu_custom_call.1} parent=1 // pred_fallthru
      _
    %51 = vsyncpa [#allocation3], 1

</llo_original>
